<compile_context>
chip_gen: v6e
topology: v6e:2x2x1
jax: 0.10.0
libtpu: 0.0.40
codegen_flags: <defaults>
</compile_context>

<pallas_src>
import jax
import jax.numpy as jnp
from jax.experimental import pallas as pl
from jax.experimental.pallas import tpu as pltpu

_LANE = 128
_GATHER_MIN_CLASSES = 8192   # below this, streaming the x tiles is cheaper
_DMA_QUEUE = 16              # outstanding gather DMAs per row block


def _round_up(a, b):
    return (a + b - 1) // b * b


def _cdiv(a, b):
    return (a + b - 1) // b


# --------------------------------------------------------------------------------------
# Streaming path (small / medium C)
# --------------------------------------------------------------------------------------

def _make_stream_kernel(n_rows):
    def kernel(x_ref, t_ref, w_ref, num_ref, den_ref):
        i = pl.program_id(0)          # row block   ("parallel")
        j = pl.program_id(1)          # class tile  ("arbitrary" reduction)

        x = x_ref[...]                # (TR, TC) native dtype -- no full-tile upcast
        tr, tc = x.shape

        # All offset math on the scalar / (TR,1) side; nothing O(TR*TC) beyond the
        # single unavoidable compare+select.
        t_local = t_ref[...] - j * tc                                   # (TR, 1)
        row_ids = jax.lax.broadcasted_iota(jnp.int32, (tr, 1), 0)      # (TR, 1)
        valid = row_ids < (n_rows - i * tr)                            # ragged last block

        lane_iota = jax.lax.broadcasted_iota(jnp.int32, (tr, tc), 1)
        onehot = lane_iota == t_local
        # <=1 non-zero per row -> the lane sum is exact in the input dtype (bf16 ok).
        picked = jnp.sum(jnp.where(onehot, x, jnp.zeros_like(x)),
                         axis=-1, keepdims=True).astype(jnp.float32)
        # Mask BEFORE the multiply: garbage rows / ragged class tiles may hold Inf/NaN.
        picked = jnp.where(valid, picked, 0.0)
        w = jnp.where(valid, w_ref[...], 0.0)

        @pl.when(j == 0)
        def _():
            num_ref[...] = jnp.zeros_like(num_ref)
            # Denominator is independent of the class tile: write it exactly once.
            den_ref[...] = jnp.zeros_like(den_ref) + jnp.sum(w)

        num_ref[...] += jnp.sum(-picked * w)

    return kernel


def _choose_stream_tiles(n_rows, n_classes, x_itemsize):
    tc = min(n_classes, 2048)
    tc_pad = max(_round_up(tc, _LANE), _LANE)
    # x tile + 2 lane-padded (TR,1) sidecars (target, combined weight).
    per_row = tc_pad * x_itemsize + 2 * _LANE * 4
    tr = (6 * 1024 * 1024) // per_row
    tr = max(16, (tr // 16) * 16)
    tr = min(tr, 8192)
    tr = min(tr, _round_up(n_rows, 16))
    # v7x megacore: keep >= 4 row blocks when the problem is big enough.
    tr = min(tr, max(16, _round_up(_cdiv(n_rows, 4), 16)))
    return tr, tc


def _stream_vmem_limit(tr, tc, x_itemsize):
    tc_pad = max(_round_up(tc, _LANE), _LANE)
    need = 2 * tr * (tc_pad * x_itemsize + 2 * _LANE * 4)   # double-buffered blocks
    need += 4 * 2 * _LANE * 4                               # tiny outputs
    return int(min(max(need + 4 * 1024 * 1024, 16 * 1024 * 1024), 32 * 1024 * 1024))


def _stream_loss_parts(x, tgt, w):
    n_rows, n_classes = x.shape
    itemsize = jnp.dtype(x.dtype).itemsize
    tr, tc = _choose_stream_tiles(n_rows, n_classes, itemsize)
    grid = (_cdiv(n_rows, tr), _cdiv(n_classes, tc))
    g_rows = grid[0]

    in_specs = [
        pl.BlockSpec((tr, tc), lambda i, j: (i, j)),   # x (native dtype)
        pl.BlockSpec((tr, 1), lambda i, j: (i, 0)),    # target
        pl.BlockSpec((tr, 1), lambda i, j: (i, 0)),    # combined weight
    ]
    out_shape = (
        jax.ShapeDtypeStruct((g_rows, 1, _LANE), jnp.float32),
        jax.ShapeDtypeStruct((g_rows, 1, _LANE), jnp.float32),
    )
    out_specs = [
        pl.BlockSpec((1, 1, _LANE), lambda i, j: (i, 0, 0)),
        pl.BlockSpec((1, 1, _LANE), lambda i, j: (i, 0, 0)),
    ]

    return pl.pallas_call(
        _make_stream_kernel(n_rows),
        out_shape=out_shape,
        grid_spec=pltpu.PrefetchScalarGridSpec(
            num_scalar_prefetch=0, grid=grid,
            in_specs=in_specs, out_specs=out_specs),
        compiler_params=pltpu.CompilerParams(
            dimension_semantics=("parallel", "arbitrary"),
            vmem_limit_bytes=_stream_vmem_limit(tr, tc, itemsize)),
    )(x, tgt, w)


# --------------------------------------------------------------------------------------
# Target-driven gather path (large C / LM vocab)
# --------------------------------------------------------------------------------------

def _make_gather_kernel(n_rows, n_classes, tr, q):
    col_aligned = (n_classes % _LANE) == 0

    def kernel(tgt_smem, x_hbm, t_ref, w_ref, num_ref, den_ref, buf, sems):
        i = pl.program_id(0)
        slot = i % 2                       # double-buffer the landing slab across blocks
        base = i * tr

        def issue(r, s):
            g = jnp.minimum(base + r, n_rows - 1)        # clamp ragged last row block
            t = tgt_smem[g]
            col = jnp.clip((t // _LANE) * _LANE, 0, n_classes - _LANE)
            if col_aligned:
                col = pl.multiple_of(col, _LANE)
            pltpu.make_async_copy(
                x_hbm.at[pl.ds(g, 1), pl.ds(col, _LANE)],
                buf.at[slot, pl.ds(r, 1), :],
                sems.at[s]).start()

        def wait_slot(r, s):
            pltpu.make_async_copy(
                x_hbm.at[pl.ds(0, 1), pl.ds(0, _LANE)],
                buf.at[slot, pl.ds(r, 1), :],
                sems.at[s]).wait()

        # q-deep in-flight DMA queue: wait the copy issued q steps ago on this sem
        # slot before re-issuing it.
        @pl.loop(0, tr)
        def _(r):
            s = r % q

            @pl.when(r >= q)
            def _():
                wait_slot(r - q, s)

            issue(r, s)

        # Drain: tr is a multiple of q, so exactly q copies remain in flight.
        @pl.loop(0, q)
        def _(s):
            wait_slot(tr - q + s, s)

        xw = buf[slot]                                        # (TR, 128) native dtype
        t_v = t_ref[...]                                      # (TR, 1) int32
        col_start = jnp.clip((t_v // _LANE) * _LANE, 0, n_classes - _LANE)
        t_local = t_v - col_start
        lane_iota = jax.lax.broadcasted_iota(jnp.int32, (tr, _LANE), 1)
        onehot = lane_iota == t_local
        picked = jnp.sum(jnp.where(onehot, xw, jnp.zeros_like(xw)),
                         axis=-1, keepdims=True).astype(jnp.float32)

        row_ids = jax.lax.broadcasted_iota(jnp.int32, (tr, 1), 0)
        valid = row_ids < (n_rows - base)
        picked = jnp.where(valid, picked, 0.0)
        w = jnp.where(valid, w_ref[...], 0.0)

        num_ref[...] = jnp.zeros_like(num_ref) + jnp.sum(-picked * w)
        den_ref[...] = jnp.zeros_like(den_ref) + jnp.sum(w)

    return kernel


def _choose_gather_rows(n_rows):
    tr = min(1024, _round_up(n_rows, 16))
    tr = min(tr, max(16, _round_up(_cdiv(n_rows, 4), 16)))   # >= 4 blocks for v7x
    tr = max(tr, _DMA_QUEUE)
    assert tr % _DMA_QUEUE == 0
    return tr


def _gather_vmem_limit(tr, x_itemsize):
    need = 2 * tr * _LANE * x_itemsize          # double-buffered gather scratch
    need += 2 * 2 * tr * _LANE * 4              # target + weight sidecar blocks
    need += 4 * 2 * _LANE * 4
    return int(min(max(need + 4 * 1024 * 1024, 16 * 1024 * 1024), 32 * 1024 * 1024))


def _gather_loss_parts(x, tgt_flat, tgt, w):
    n_rows, n_classes = x.shape
    itemsize = jnp.dtype(x.dtype).itemsize
    tr = _choose_gather_rows(n_rows)
    g_rows = _cdiv(n_rows, tr)

    in_specs = [
        pl.BlockSpec(memory_space=pl.ANY),                    # x stays in HBM
        pl.BlockSpec((tr, 1), lambda i, tref: (i, 0)),        # target (vector side)
        pl.BlockSpec((tr, 1), lambda i, tref: (i, 0)),        # combined weight
    ]
    out_shape = (
        jax.ShapeDtypeStruct((g_rows, 1, _LANE), jnp.float32),
        jax.ShapeDtypeStruct((g_rows, 1, _LANE), jnp.float32),
    )
    out_specs = [
        pl.BlockSpec((1, 1, _LANE), lambda i, tref: (i, 0, 0)),
        pl.BlockSpec((1, 1, _LANE), lambda i, tref: (i, 0, 0)),
    ]

    return pl.pallas_call(
        _make_gather_kernel(n_rows, n_classes, tr, _DMA_QUEUE),
        out_shape=out_shape,
        grid_spec=pltpu.PrefetchScalarGridSpec(
            num_scalar_prefetch=1, grid=(g_rows,),
            in_specs=in_specs, out_specs=out_specs,
            scratch_shapes=[
                pltpu.VMEM((2, tr, _LANE), x.dtype),
                pltpu.SemaphoreType.DMA((_DMA_QUEUE,)),
            ]),
        compiler_params=pltpu.CompilerParams(
            dimension_semantics=("parallel",),
            vmem_limit_bytes=_gather_vmem_limit(tr, itemsize)),
    )(tgt_flat, x, tgt, w)


# --------------------------------------------------------------------------------------
# Public wrapper (mirrors ClassiferCriterion.forward)
# --------------------------------------------------------------------------------------

def classifier_criterion(inp, target, mask, class_mask=None,
                         gather_min_classes=_GATHER_MIN_CLASSES):
    """inp: (m, seq_len+1, n_classes) log-probs; target/mask[/class_mask]: (m, seq_len+1)."""
    m_b, t_len, n_classes = inp.shape
    n_rows = m_b * t_len

    # Only cheap, layout-preserving reshapes in the wrapper; x keeps its dtype.
    x = inp.reshape(n_rows, n_classes)
    tgt = target.reshape(n_rows, 1).astype(jnp.int32)
    w = mask.reshape(n_rows, 1).astype(jnp.float32)
    if class_mask is not None:
        # Pre-combine: one sidecar stream instead of two, and no in-kernel mul.
        w = w * class_mask.reshape(n_rows, 1).astype(jnp.float32)

    if n_classes >= max(gather_min_classes, _LANE):
        # Flat targets are scalar-prefetched into SMEM (4*n_rows bytes) to drive the DMAs.
        tgt_flat = target.reshape(n_rows).astype(jnp.int32)
        num_part, den_part = _gather_loss_parts(x, tgt_flat, tgt, w)
    else:
        num_part, den_part = _stream_loss_parts(x, tgt, w)

    # Tiny final reduction + division in XLA (keeps row blocks megacore-parallel).
    return jnp.sum(num_part[:, 0, 0]) / jnp.sum(den_part[:, 0, 0])


# --------------------------------------------------------------------------------------
# Reference + self-test
# --------------------------------------------------------------------------------------

def _reference(inp, target, mask, class_mask=None):
    n, c = inp.shape[0] * inp.shape[1], inp.shape[2]
    x = inp.reshape(n, c).astype(jnp.float32)
    t = target.reshape(n)
    m = mask.reshape(n).astype(jnp.float32)
    picked = jnp.take_along_axis(x, t[:, None], axis=1)[:, 0]
    out = -picked * m
    if class_mask is None:
        return jnp.sum(out) / jnp.sum(m)
    cm = class_mask.reshape(n).astype(jnp.float32)
    return jnp.sum(out * cm) / jnp.sum(m * cm)


if __name__ == "__main__":
    key = jax.random.PRNGKey(0)
    k = jax.random.split(key, 12)

    # 1) small C, class_mask=None (streaming path)
    m, seq1, C = 2, 8, 32
    logp = jax.nn.log_softmax(jax.random.normal(k[0], (m, seq1, C), jnp.float32), -1)
    tgt = jax.random.randint(k[1], (m, seq1), 0, C)
    msk = jnp.concatenate([jnp.ones((m, 6), jnp.float32),
                           jnp.zeros((m, 2), jnp.float32)], axis=1)
    cmask = (jax.random.uniform(k[2], (m, seq1)) > 0.3).astype(jnp.float32)

    out = jax.block_until_ready(classifier_criterion(logp, tgt, msk))
    ref = _reference(logp, tgt, msk)
    assert jnp.allclose(out, ref, rtol=1e-5, atol=1e-5), (out, ref)

    # 2) small C with class_mask
    out = jax.block_until_ready(classifier_criterion(logp, tgt, msk, cmask))
    ref = _reference(logp, tgt, msk, cmask)
    assert jnp.allclose(out, ref, rtol=1e-5, atol=1e-5), (out, ref)

    # 3) ragged row count + odd class count (exercises in-kernel validity masks)
    logp2 = jax.nn.log_softmax(jax.random.normal(k[3], (3, 7, 50), jnp.float32), -1)
    tgt2 = jax.random.randint(k[4], (3, 7), 0, 50)
    msk2 = (jax.random.uniform(k[5], (3, 7)) > 0.2).astype(jnp.float32)
    out = jax.block_until_ready(classifier_criterion(logp2, tgt2, msk2))
    ref = _reference(logp2, tgt2, msk2)
    assert jnp.allclose(out, ref, rtol=1e-5, atol=1e-5), (out, ref)

    # 4) medium C with ragged class tiles (streaming, inner class-tile grid axis)
    logp3 = jax.nn.log_softmax(jax.random.normal(k[6], (2, 4, 3000), jnp.float32), -1)
    tgt3 = jax.random.randint(k[7], (2, 4), 0, 3000)
    msk3 = (jax.random.uniform(k[8], (2, 4)) > 0.25).astype(jnp.float32)
    out = jax.block_until_ready(classifier_criterion(logp3, tgt3, msk3))
    ref = _reference(logp3, tgt3, msk3)
    assert jnp.allclose(out, ref, rtol=1e-5, atol=1e-5), (out, ref)

    # 5) bf16 inputs (no full-tile f32 upcast path)
    logp_bf = logp.astype(jnp.bfloat16)
    out = jax.block_until_ready(classifier_criterion(logp_bf, tgt, msk, cmask))
    ref = _reference(logp_bf, tgt, msk, cmask)
    assert jnp.allclose(out, ref, rtol=1e-5, atol=1e-5), (out, ref)

    # 6) large vocab -> target-driven gather path (manual DMA), ragged rows + class_mask
    V = 8192
    logp4 = jax.nn.log_softmax(jax.random.normal(k[9], (3, 7, V), jnp.float32), -1)
    tgt4 = jax.random.randint(k[10], (3, 7), 0, V)
    msk4 = (jax.random.uniform(k[11], (3, 7)) > 0.2).astype(jnp.float32)
    cmask4 = (jax.random.uniform(k[2], (3, 7)) > 0.4).astype(jnp.float32)
    out = jax.block_until_ready(classifier_criterion(logp4, tgt4, msk4, cmask4))
    ref = _reference(logp4, tgt4, msk4, cmask4)
    assert jnp.allclose(out, ref, rtol=1e-5, atol=1e-5), (out, ref)

    print("KERNEL_OK")
</pallas_src>

<mosaic_0001>
module attributes {stable_mosaic.version = 11 : i64} {
  func.func @kernel(%arg0: i32, %arg1: i32, %arg2: memref<16x32xf32, #tpu.memory_space<vmem>>, %arg3: memref<16x1xi32, #tpu.memory_space<vmem>>, %arg4: memref<16x1xf32, #tpu.memory_space<vmem>>, %arg5: memref<1x1x128xf32, #tpu.memory_space<vmem>>, %arg6: memref<1x1x128xf32, #tpu.memory_space<vmem>>) attributes {dimension_semantics = [#tpu.dimension_semantics<parallel>, #tpu.dimension_semantics<arbitrary>], iteration_bounds = array<i64: 1, 1>, scalar_prefetch = 0 : i64, scratch_operands = 0 : i64, tpu.core_type = #tpu.core_type<tc>, window_params = [{transform_indices = @transform_0, window_bounds = array<i64: 16, 32>}, {transform_indices = @transform_1, window_bounds = array<i64: 16, 1>}, {transform_indices = @transform_2, window_bounds = array<i64: 16, 1>}, {transform_indices = @transform_3, window_bounds = array<i64: 1, 1, 128>}, {transform_indices = @transform_4, window_bounds = array<i64: 1, 1, 128>}]} {
    %c0 = arith.constant 0 : index
    %c0_0 = arith.constant 0 : index
    %0 = vector.load %arg2[%c0, %c0_0] : memref<16x32xf32, #tpu.memory_space<vmem>>, vector<16x32xf32>
    %c0_1 = arith.constant 0 : index
    %c0_2 = arith.constant 0 : index
    %1 = vector.load %arg3[%c0_1, %c0_2] : memref<16x1xi32, #tpu.memory_space<vmem>>, vector<16x1xi32>
    %c32_i32 = arith.constant 32 : i32
    %2 = arith.muli %arg1, %c32_i32 : i32
    %3 = vector.broadcast %2 : i32 to vector<16x1xi32>
    %4 = arith.subi %1, %3 : vector<16x1xi32>
    %5 = tpu.iota {dimensions = array<i32: 0>} : vector<16x1xi32>
    %c16_i32 = arith.constant 16 : i32
    %6 = arith.muli %arg0, %c16_i32 : i32
    %c16_i32_3 = arith.constant 16 : i32
    %7 = arith.subi %c16_i32_3, %6 : i32
    %8 = vector.broadcast %7 : i32 to vector<16x1xi32>
    %9 = arith.cmpi slt, %5, %8 : vector<16x1xi32>
    %10 = tpu.iota {dimensions = array<i32: 1>} : vector<16x32xi32>
    %11 = vector.broadcast %4 : vector<16x1xi32> to vector<16x32xi32>
    %12 = arith.cmpi eq, %10, %11 : vector<16x32xi32>
    %cst = arith.constant 0.000000e+00 : f32
    %13 = vector.broadcast %cst : f32 to vector<16x32xf32>
    %14 = arith.select %12, %0, %13 : vector<16x32xi1>, vector<16x32xf32>
    %cst_4 = arith.constant dense<0.000000e+00> : vector<16xf32>
    %15 = vector.multi_reduction <add>, %14, %cst_4 [1] : vector<16x32xf32> to vector<16xf32>
    %16 = vector.shape_cast %15 : vector<16xf32> to vector<16x1xf32>
    %cst_5 = arith.constant 0.000000e+00 : f32
    %17 = vector.broadcast %cst_5 : f32 to vector<16x1xf32>
    %18 = arith.select %9, %16, %17 : vector<16x1xi1>, vector<16x1xf32>
    %c0_6 = arith.constant 0 : index
    %c0_7 = arith.constant 0 : index
    %19 = vector.load %arg4[%c0_6, %c0_7] : memref<16x1xf32, #tpu.memory_space<vmem>>, vector<16x1xf32>
    %cst_8 = arith.constant 0.000000e+00 : f32
    %20 = vector.broadcast %cst_8 : f32 to vector<16x1xf32>
    %21 = arith.select %9, %19, %20 : vector<16x1xi1>, vector<16x1xf32>
    %c0_i32 = arith.constant 0 : i32
    %22 = arith.cmpi eq, %arg1, %c0_i32 : i32
    %23 = arith.extui %22 : i1 to i32
    %c0_i32_9 = arith.constant 0 : i32
    %24 = arith.cmpi ne, %23, %c0_i32_9 : i32
    scf.if %24 {
      %cst_18 = arith.constant 0.000000e+00 : f32
      %36 = vector.broadcast %cst_18 : f32 to vector<1x1x128xf32>
      %c0_19 = arith.constant 0 : index
      %c0_20 = arith.constant 0 : index
      %c0_21 = arith.constant 0 : index
      %37 = vector.load %arg5[%c0_19, %c0_20, %c0_21] : memref<1x1x128xf32, #tpu.memory_space<vmem>>, vector<1x1x128xf32>
      tpu.vector_store %arg5[%c0_19, %c0_20, %c0_21], %36 {strides = array<i32>} : memref<1x1x128xf32, #tpu.memory_space<vmem>>, vector<1x1x128xf32>,
      %cst_22 = arith.constant 0.000000e+00 : f32
      %38 = vector.broadcast %cst_22 : f32 to vector<1x1x128xf32>
      %39 = vector.shape_cast %21 : vector<16x1xf32> to vector<1x16x1xf32>
      %cst_23 = arith.constant dense<0.000000e+00> : vector<1xf32>
      %40 = vector.multi_reduction <add>, %39, %cst_23 [1, 2] : vector<1x16x1xf32> to vector<1xf32>
      %41 = vector.shape_cast %40 : vector<1xf32> to vector<1x1x1xf32>
      %42 = vector.extract %41[0, 0, 0] : f32 from vector<1x1x1xf32>
      %43 = vector.broadcast %42 : f32 to vector<1x1x128xf32>
      %44 = arith.addf %38, %43 : vector<1x1x128xf32>
      %c0_24 = arith.constant 0 : index
      %c0_25 = arith.constant 0 : index
      %c0_26 = arith.constant 0 : index
      %45 = vector.load %arg6[%c0_24, %c0_25, %c0_26] : memref<1x1x128xf32, #tpu.memory_space<vmem>>, vector<1x1x128xf32>
      tpu.vector_store %arg6[%c0_24, %c0_25, %c0_26], %44 {strides = array<i32>} : memref<1x1x128xf32, #tpu.memory_space<vmem>>, vector<1x1x128xf32>,
    } else {
    }
    %c0_10 = arith.constant 0 : index
    %c0_11 = arith.constant 0 : index
    %c0_12 = arith.constant 0 : index
    %25 = vector.load %arg5[%c0_10, %c0_11, %c0_12] : memref<1x1x128xf32, #tpu.memory_space<vmem>>, vector<1x1x128xf32>
    %cst_13 = arith.constant 0.000000e+00 : f32
    %26 = vector.broadcast %cst_13 : f32 to vector<16x1xf32>
    %27 = arith.subf %26, %18 : vector<16x1xf32>
    %28 = arith.mulf %27, %21 : vector<16x1xf32>
    %29 = vector.shape_cast %28 : vector<16x1xf32> to vector<1x16x1xf32>
    %cst_14 = arith.constant dense<0.000000e+00> : vector<1xf32>
    %30 = vector.multi_reduction <add>, %29, %cst_14 [1, 2] : vector<1x16x1xf32> to vector<1xf32>
    %31 = vector.shape_cast %30 : vector<1xf32> to vector<1x1x1xf32>
    %32 = vector.extract %31[0, 0, 0] : f32 from vector<1x1x1xf32>
    %33 = vector.broadcast %32 : f32 to vector<1x1x128xf32>
    %34 = arith.addf %25, %33 : vector<1x1x128xf32>
    %c0_15 = arith.constant 0 : index
    %c0_16 = arith.constant 0 : index
    %c0_17 = arith.constant 0 : index
    %35 = vector.load %arg5[%c0_15, %c0_16, %c0_17] : memref<1x1x128xf32, #tpu.memory_space<vmem>>, vector<1x1x128xf32>
    tpu.vector_store %arg5[%c0_15, %c0_16, %c0_17], %34 {strides = array<i32>} : memref<1x1x128xf32, #tpu.memory_space<vmem>>, vector<1x1x128xf32>,
    return
  }
  func.func @transform_0(%arg0: i32, %arg1: i32) -> (i32, i32) {
    %c0_i32 = arith.constant 0 : i32
    return %arg0, %arg1 : i32, i32
  }
  func.func @transform_1(%arg0: i32, %arg1: i32) -> (i32, i32) {
    %c0_i32 = arith.constant 0 : i32
    %c0_i32_0 = arith.constant 0 : i32
    return %arg0, %c0_i32 : i32, i32
  }
  func.func @transform_2(%arg0: i32, %arg1: i32) -> (i32, i32) {
    %c0_i32 = arith.constant 0 : i32
    %c0_i32_0 = arith.constant 0 : i32
    return %arg0, %c0_i32 : i32, i32
  }
  func.func @transform_3(%arg0: i32, %arg1: i32) -> (i32, i32, i32) {
    %c0_i32 = arith.constant 0 : i32
    %c0_i32_0 = arith.constant 0 : i32
    %c0_i32_1 = arith.constant 0 : i32
    return %arg0, %c0_i32, %c0_i32_0 : i32, i32, i32
  }
  func.func @transform_4(%arg0: i32, %arg1: i32) -> (i32, i32, i32) {
    %c0_i32 = arith.constant 0 : i32
    %c0_i32_0 = arith.constant 0 : i32
    %c0_i32_1 = arith.constant 0 : i32
    return %arg0, %c0_i32, %c0_i32_0 : i32, i32, i32
  }
}

</mosaic_0001>

<llo_original>
// kernel: tpu_custom_call.1
$region0: #{tpu_custom_call.1}
  #allocation0 [shape = 'u32[]', space=smem, size = 0x4, offset = 0x4, fixed_abs, tag = 'smem constant byte address 0x4 - core index']
  #allocation1 [shape = 'u32[144,128]{1,0:T(1,128)}', space=vmem, size = 0x12000, scoped, tag = 'internal scratch']
  %s0 = inlined_call_operand.vmem [shape: f32[16,32], index: 0, kind: input, shape index: {}]
  %s1 = inlined_call_operand.vmem [shape: s32[16,1], index: 1, kind: input, shape index: {}]
  %s2 = inlined_call_operand.vmem [shape: f32[16,1], index: 2, kind: input, shape index: {}]
  %s3 = inlined_call_operand.hbm [shape: f32[1,1,128], index: 3, kind: output, shape index: {0}]
  %s4 = inlined_call_operand.hbm [shape: f32[1,1,128], index: 4, kind: output, shape index: {1}]
  %5 = xla_tuple %s3, %s4
  %s6 = sld [smem:[#allocation0]]
  $region34: #{tpu_custom_call.1} parent=0
    _
  %s8 = ssub.s32 1, %s6
  %s9 = scalar_select 0, %s8, %s6
  $region1: #{tpu_custom_call.1} parent=0
    #allocation2 [shape = 'u8[512]{0}', space=vmem, size = 0x400, scoped, tag = 'output window, operand 0, single buffered']
    #allocation3 [shape = 's32[1]{0}', space=sflag, size = 0x4, scoped, tag = 'scoped memory for tpu_custom_call.1']
    #allocation4 [shape = 'u8[512]{0}', space=vmem, size = 0x400, scoped, tag = 'output window, operand 1, single buffered']
    #allocation5 [shape = 's32[1]{0}', space=sflag, size = 0x4, scoped, tag = 'scoped memory for tpu_custom_call.1']
    %10 = vsyncpa [#allocation3], 0
    %11 = vsyncpa [#allocation5], 0
    // Predicated region
    $region2: #{tpu_custom_call.1} parent=1 // pred_check
      _
    $region3: #{tpu_custom_call.1} parent=1 // pred_check_branch
      %13 = sbr.rel (0) target = $region5
    $region4: #{tpu_custom_call.1} parent=1 // pred_region
      _
    $region5: #{tpu_custom_call.1} parent=1 // pred_fallthru
      _
    // Predicated region
    $region6: #{tpu_custom_call.1} parent=1 // pred_check
      _
    $region7: #{tpu_custom_call.1} parent=1 // pred_check_branch
      %15 = sbr.rel (0) target = $region9
    $region8: #{tpu_custom_call.1} parent=1 // pred_region
      _
    $region9: #{tpu_custom_call.1} parent=1 // pred_fallthru
      _
    // Predicated region
    $region10: #{tpu_custom_call.1} parent=1 // pred_check
      _
    $region11: #{tpu_custom_call.1} parent=1 // pred_check_branch
      %17 = sbr.rel (0) target = $region13
    $region12: #{tpu_custom_call.1} parent=1 // pred_region
      _
    $region13: #{tpu_custom_call.1} parent=1 // pred_fallthru
      _
    %v18 = vld [vmem:[%s0] sm:$0xff]
    %v19 = vld [vmem:[%s0 + $0x8] sm:$0xff]
    %v20 = vld [vmem:[%s1] sm:$0xff]
    %v21 = vld [vmem:[%s1 + $0x8] sm:$0xff]
    %s22 = smul.u32 0, 32
    %v23 = vstv %s22
    %v24 = vsub.s32 %v20, %v23
    %v25 = vsub.s32 %v21, %v23
    %v26 = vlaneseq
    %v27 = vshrl.u32 %v26, 7
    %v28 = vadd.s32 %v27, 8
    %s29 = smul.u32 0, 16
    %s30 = ssub.s32 16, %s29
    %v31 = vstv %s30
    %vm32 = vcmp.lt.s32.totalorder %v27, %v31
    %vm33 = vcmp.lt.s32.totalorder %v28, %v31
    %v34 = vlaneseq
    %v35 = vand.u32 %v34, 127
    %36 = vset.pattern.permute.xlu0 0
    %37 = vperm.xlu0 %36, %v24
    %v38 = vpop.permute.xlu0 %37
    %39 = vset.pattern.permute.xlu0 0
    %40 = vperm.xlu0 %39, %v25
    %v41 = vpop.permute.xlu0 %40
    %vm42 = vcmp.eq.s32.totalorder %v35, %v38
    %vm43 = vcmp.eq.s32.totalorder %v35, %v41
    %v44 = vsel %vm42, %v18, 0.0
    %v45 = vsel %vm43, %v19, 0.0
    %vm46 = vcmask 261120
    %v47 = vsel %vm46, %v44, 0.0
    %48 = vadd.xlane.f32.xlu0 %v47
    %v49 = vpop.xlane.xlu0 %48
    %v50 = vsel %vm46, %v45, 0.0
    %51 = vadd.xlane.f32.xlu0 %v50
    %v52 = vpop.xlane.xlu0 %51
    %v53 = vsel %vm32, %v49, 0.0
    %v54 = vsel %vm33, %v52, 0.0
    %v55 = vld [vmem:[%s2] sm:$0xff]
    %v56 = vld [vmem:[%s2 + $0x8] sm:$0xff]
    %v57 = vsel %vm32, %v55, 0.0
    %v58 = vsel %vm33, %v56, 0.0
    %p59 = scmp.eq.s32.totalorder 0, 0
    // Predicated region
    $region14: #{tpu_custom_call.1} parent=1 // pred_check
      %p60 = pneg %p59
    $region15: #{tpu_custom_call.1} parent=1 // pred_check_branch
      %62 = sbr.rel (%p60) target = $region17
    $region16: #{tpu_custom_call.1} parent=1 // pred_region
      %63 = vst [vmem:[#allocation2] sm:$0x1] 0.0
      %vm64 = vcmask 7168
      %v65 = vsel %vm64, %v57, 0.0
      %v66 = vsel %vm64, %v58, 0.0
      %v67 = vadd.f32 %v65, %v66
      %68 = vadd.xlane.f32.xlu0 %v67
      %v69 = vpop.xlane.xlu0 %68
      %v70 = vrot.slane %v69, 4
      %v71 = vadd.f32 %v69, %v70
      %v72 = vrot.slane %v71, 2
      %v73 = vadd.f32 %v71, %v72
      %v74 = vrot.slane %v73, 1
      %v75 = vadd.f32 %v73, %v74
      %s76 = vtos %v75
      %v77 = vstv %s76
      %v78 = vadd.f32 %v77, 0.0
      %79 = vst [vmem:[#allocation4] sm:$0x1] %v78
    $region17: #{tpu_custom_call.1} parent=1 // pred_fallthru
      _
    %v80 = vld [vmem:[#allocation2] sm:$0x1]
    %v81 = vsub.f32 0.0, %v53
    %v82 = vsub.f32 0.0, %v54
    %v83 = vmul.f32 %v81, %v57
    %v84 = vmul.f32 %v82, %v58
    %vm85 = vcmask 7168
    %v86 = vsel %vm85, %v83, 0.0
    %v87 = vsel %vm85, %v84, 0.0
    %v88 = vadd.f32 %v86, %v87
    %89 = vadd.xlane.f32.xlu0 %v88
    %v90 = vpop.xlane.xlu0 %89
    %v91 = vrot.slane %v90, 4
    %v92 = vadd.f32 %v90, %v91
    %v93 = vrot.slane %v92, 2
    %v94 = vadd.f32 %v92, %v93
    %v95 = vrot.slane %v94, 1
    %v96 = vadd.f32 %v94, %v95
    %s97 = vtos %v96
    %v98 = vstv %s97
    %v99 = vadd.f32 %v80, %v98
    %100 = vst [vmem:[#allocation2] sm:$0x1] %v99
    // Predicated region
    $region18: #{tpu_custom_call.1} parent=1 // pred_check
      _
    $region19: #{tpu_custom_call.1} parent=1 // pred_check_branch
      %102 = sbr.rel (0) target = $region21
    $region20: #{tpu_custom_call.1} parent=1 // pred_region
      %s104 = ssub.s32 16, 16
      %105 = vsyncadd [#allocation3], %s104
      %s107 = sshll.u32 [#allocation2], 4
      %s108 = int_to_ptr.vmem [resolvable:$true] %s107
      %110 = dma.vmem_to_hbm [thread:$0]  %s108, 16, %s3, [#allocation3]
    $region21: #{tpu_custom_call.1} parent=1 // pred_fallthru
      _
    // Predicated region
    $region22: #{tpu_custom_call.1} parent=1 // pred_check
      _
    $region23: #{tpu_custom_call.1} parent=1 // pred_check_branch
      %112 = sbr.rel (0) target = $region25
    $region24: #{tpu_custom_call.1} parent=1 // pred_region
      %s114 = ssub.s32 16, 16
      %115 = vsyncadd [#allocation5], %s114
      %s117 = sshll.u32 [#allocation4], 4
      %s118 = int_to_ptr.vmem [resolvable:$true] %s117
      %120 = dma.vmem_to_hbm [thread:$0]  %s118, 16, %s4, [#allocation5]
    $region25: #{tpu_custom_call.1} parent=1 // pred_fallthru
      _
    // Predicated region
    $region26: #{tpu_custom_call.1} parent=1 // pred_check
      _
    $region27: #{tpu_custom_call.1} parent=1 // pred_check_branch
      %122 = sbr.rel (0) target = $region29
    $region28: #{tpu_custom_call.1} parent=1 // pred_region
      %123 = dma.done [#allocation3], 16
    $region29: #{tpu_custom_call.1} parent=1 // pred_fallthru
      _
    // Predicated region
    $region30: #{tpu_custom_call.1} parent=1 // pred_check
      _
    $region31: #{tpu_custom_call.1} parent=1 // pred_check_branch
      %125 = sbr.rel (0) target = $region33
    $region32: #{tpu_custom_call.1} parent=1 // pred_region
      %126 = dma.done [#allocation5], 16
    $region33: #{tpu_custom_call.1} parent=1 // pred_fallthru
      _
    %127 = vsyncpa [#allocation3], 1
    %128 = vsyncpa [#allocation5], 1

</llo_original>
